<compile_context>
chip_gen: v7x
topology: tpu7x:2x2x1
jax: 0.10.0
libtpu: 0.0.40
codegen_flags: <defaults>
</compile_context>

<pallas_src>
import functools

import jax
import jax.numpy as jnp
from jax.experimental import pallas as pl
from jax.experimental.pallas import tpu as pltpu


def encoder_block_kernel(x_ref, w_ref, m_ref, aff_ref, o_ref, rhs_ref,
                         *, K, W, HW, Cpad):
    Bt = x_ref.shape[0]
    Cout = o_ref.shape[1]
    pad = K // 2
    masks = m_ref[...]                                   # (K*K, HW), loaded once

    # ---- im2col RHS: (K*K*Cpad, Bt*HW), built with XLU rolls + boundary masks ----
    for b in range(Bt):
        img = x_ref[b]                                   # (Cpad, HW) full 8-sublane tiles
        for ky in range(K):
            for kx in range(K):
                t = ky * K + kx
                dy, dx = ky - pad, kx - pad
                s = dy * W + dx                          # source pixel offset of this tap
                if dy == 0 and dx == 0:
                    slab = img                           # center tap: no roll, no mask
                else:
                    # out[i] = img[i + s] for valid pixels, 0 at the image border.
                    slab = pltpu.roll(img, shift=(-s) % HW, axis=1) * masks[t:t + 1, :]
                # full-tile, lane-aligned store (t*Cpad is a multiple of 8,
                # b*HW a multiple of 128 at these shapes).
                rhs_ref[t * Cpad:(t + 1) * Cpad, b * HW:(b + 1) * HW] = slab

    # ---- ONE wide MXU matmul for all Bt images ----
    acc = jnp.dot(w_ref[...], rhs_ref[...],
                  preferred_element_type=jnp.float32)    # (Cout, Bt*HW)

    # ---- per-image instance norm (centered 2-pass) + AdaIN + ReLU ----
    inv_n = 1.0 / HW
    inv_nm1 = 1.0 / (HW - 1)
    for b in range(Bt):
        a = acc[:, b * HW:(b + 1) * HW]                  # (Cout, HW), 128-lane aligned slice
        mean = jnp.sum(a, axis=1, keepdims=True) * inv_n
        d = a - mean
        var = jnp.sum(d * d, axis=1, keepdims=True) * inv_nm1   # torch unbiased std
        inv_std = 1.0 / jnp.maximum(jnp.sqrt(var), 1e-5)        # clamp(std, 1e-5)
        aff = aff_ref[b]                                 # (2*Cout, 1): [scale; bias]
        cs = aff[0:Cout, :] * inv_std                    # (Cout, 1)
        o_ref[b] = jnp.maximum(d * cs + aff[Cout:2 * Cout, :], 0.0)   # lane-dense store


def encoder_block(x_nchw, emotion, params, *, batch_tile=None):
    """x_nchw: (B, Cin, H, W) float32; emotion: (B, E) float32."""
    conv_w = params["conv_w"]                            # (K, K, Cin, Cout) HWIO
    B, Cin, H, W = x_nchw.shape
    K = conv_w.shape[0]
    Cout = conv_w.shape[-1]
    assert K == 3 and conv_w.shape[1] == 3, "specialized to 3x3 / stride 1 / pad 1"
    HW = H * W
    Cpad = ((Cin + 7) // 8) * 8                          # full 8-sublane channel groups

    if batch_tile is None:
        # Pack as many images per grid step as possible while keeping >= 2
        # grid steps so both v7x TensorCores are fed.
        batch_tile = max(1, B // 2)
    while B % batch_tile != 0:
        batch_tile -= 1
    Bt = batch_tile
    NB = B // Bt

    # Free, contiguous reshape of the NCHW input; channel-pad to Cpad with zeros.
    x_flat = x_nchw.reshape(B, Cin, HW)
    if Cpad > Cin:
        x_flat = jnp.pad(x_flat, ((0, 0), (0, Cpad - Cin), (0, 0)))

    # Conv weight as (Cout, K*K*Cpad), tap-major rows ((ky, kx, cin)) to match RHS.
    w_t = jnp.transpose(conv_w, (3, 0, 1, 2))            # (Cout, K, K, Cin)
    if Cpad > Cin:
        w_t = jnp.pad(w_t, ((0, 0), (0, 0), (0, 0), (0, Cpad - Cin)))
    w_mat = w_t.reshape(Cout, K * K * Cpad)
    # conv bias intentionally not used: cancelled exactly by IN mean subtraction.

    # AdaIN affine per batch, computed once here; merged into a single input.
    scale = emotion @ params["scale_w"] + params["scale_b"]      # (B, Cout)
    bias = emotion @ params["bias_w"] + params["bias_b"]         # (B, Cout)
    affine = jnp.concatenate([scale, bias], axis=1).reshape(B, 2 * Cout, 1)

    # Per-tap boundary-validity masks (9, HW) for the rolled taps.
    ys = jnp.arange(HW, dtype=jnp.int32) // W
    xs = jnp.arange(HW, dtype=jnp.int32) % W
    mask_rows = []
    for ky in range(K):
        for kx in range(K):
            dy, dx = ky - K // 2, kx - K // 2
            valid = ((ys + dy >= 0) & (ys + dy < H) &
                     (xs + dx >= 0) & (xs + dx < W))
            mask_rows.append(valid.astype(jnp.float32))
    masks = jnp.stack(mask_rows, axis=0)                 # (K*K, HW)

    kernel = functools.partial(encoder_block_kernel, K=K, W=W, HW=HW, Cpad=Cpad)

    out_flat = pl.pallas_call(
        kernel,
        out_shape=jax.ShapeDtypeStruct((B, Cout, HW), jnp.float32),
        grid_spec=pltpu.PrefetchScalarGridSpec(
            num_scalar_prefetch=0,
            grid=(NB,),
            in_specs=[
                pl.BlockSpec((Bt, Cpad, HW), lambda g: (g, 0, 0)),        # x (flat NCHW, Cpad)
                pl.BlockSpec((Cout, K * K * Cpad), lambda g: (0, 0)),     # conv weight
                pl.BlockSpec((K * K, HW), lambda g: (0, 0)),              # tap masks
                pl.BlockSpec((Bt, 2 * Cout, 1), lambda g: (g, 0, 0)),     # AdaIN scale|bias
            ],
            out_specs=pl.BlockSpec((Bt, Cout, HW), lambda g: (g, 0, 0)),
            scratch_shapes=[
                pltpu.VMEM((K * K * Cpad, Bt * HW), jnp.float32),         # wide im2col RHS
            ],
        ),
        compiler_params=pltpu.CompilerParams(dimension_semantics=("parallel",)),
    )(x_flat, w_mat, masks, affine)

    # Free, contiguous reshape back to NCHW.
    return out_flat.reshape(B, Cout, H, W)


def reference_encoder_block(x_nchw, emotion, params):
    """Pure-JAX reference matching the PyTorch forward semantics."""
    x = jnp.transpose(x_nchw, (0, 2, 3, 1))
    y = jax.lax.conv_general_dilated(
        x, params["conv_w"], window_strides=(1, 1), padding="SAME",
        dimension_numbers=("NHWC", "HWIO", "NHWC"),
    ) + params["conv_b"].reshape(1, 1, 1, -1)
    n = y.shape[1] * y.shape[2]
    mean = y.mean(axis=(1, 2), keepdims=True)
    var = ((y - mean) ** 2).sum(axis=(1, 2), keepdims=True) / (n - 1)
    std = jnp.maximum(jnp.sqrt(var), 1e-5)
    normalized = (y - mean) / std
    B = x.shape[0]
    scale = (emotion @ params["scale_w"] + params["scale_b"]).reshape(B, 1, 1, -1)
    bias = (emotion @ params["bias_w"] + params["bias_b"]).reshape(B, 1, 1, -1)
    out = jnp.maximum(scale * normalized + bias, 0.0)
    return jnp.transpose(out, (0, 3, 1, 2))


def make_params(key, in_channels, out_channels, emotion_dim, kernel_size=3):
    ks = jax.random.split(key, 6)
    s = 0.1
    return {
        "conv_w": s * jax.random.normal(
            ks[0], (kernel_size, kernel_size, in_channels, out_channels), jnp.float32),
        "conv_b": s * jax.random.normal(ks[1], (1, out_channels), jnp.float32),
        "scale_w": s * jax.random.normal(ks[2], (emotion_dim, out_channels), jnp.float32),
        "scale_b": s * jax.random.normal(ks[3], (1, out_channels), jnp.float32),
        "bias_w": s * jax.random.normal(ks[4], (emotion_dim, out_channels), jnp.float32),
        "bias_b": s * jax.random.normal(ks[5], (1, out_channels), jnp.float32),
    }


if __name__ == "__main__":
    # B=4 so the kernel runs 2 grid steps of Bt=2 images each (exercises both
    # the batched wide matmul and the >=2-step megacore split).
    B, Cin, Cout, H, W, E = 4, 4, 8, 16, 16, 8

    key = jax.random.PRNGKey(0)
    kx, ke, kp = jax.random.split(key, 3)
    x = jax.random.normal(kx, (B, Cin, H, W), jnp.float32)       # NCHW, like PyTorch
    emotion = jax.random.normal(ke, (B, E), jnp.float32)
    params = make_params(kp, Cin, Cout, E)

    out = encoder_block(x, emotion, params)
    out = jax.block_until_ready(out)

    ref = reference_encoder_block(x, emotion, params)
    assert out.shape == (B, Cout, H, W)
    assert jnp.allclose(out, ref, rtol=1e-4, atol=1e-4), "mismatch vs reference"

    print("KERNEL_OK")
</pallas_src>

<mosaic_0001>
module attributes {stable_mosaic.version = 11 : i64} {
  func.func @encoder_block_kernel(%arg0: i32, %arg1: memref<2x8x256xf32, #tpu.memory_space<vmem>>, %arg2: memref<8x72xf32, #tpu.memory_space<vmem>>, %arg3: memref<9x256xf32, #tpu.memory_space<vmem>>, %arg4: memref<2x16x1xf32, #tpu.memory_space<vmem>>, %arg5: memref<2x8x256xf32, #tpu.memory_space<vmem>>, %arg6: memref<72x512xf32, #tpu.memory_space<vmem>>) attributes {dimension_semantics = [#tpu.dimension_semantics<parallel>], iteration_bounds = array<i64: 2>, scalar_prefetch = 0 : i64, scratch_operands = 1 : i64, tpu.core_type = #tpu.core_type<tc>, window_params = [{transform_indices = @transform_0, window_bounds = array<i64: 2, 8, 256>}, {pipeline_mode = #tpu.pipeline_mode<synchronous>, transform_indices = @transform_1, window_bounds = array<i64: 8, 72>}, {pipeline_mode = #tpu.pipeline_mode<synchronous>, transform_indices = @transform_2, window_bounds = array<i64: 9, 256>}, {transform_indices = @transform_3, window_bounds = array<i64: 2, 16, 1>}, {transform_indices = @transform_4, window_bounds = array<i64: 2, 8, 256>}]} {
    %c0 = arith.constant 0 : index
    %c0_0 = arith.constant 0 : index
    %0 = vector.load %arg3[%c0, %c0_0] : memref<9x256xf32, #tpu.memory_space<vmem>>, vector<9x256xf32>
    %c0_1 = arith.constant 0 : index
    %c0_2 = arith.constant 0 : index
    %c0_3 = arith.constant 0 : index
    %1 = vector.load %arg1[%c0_1, %c0_2, %c0_3] : memref<2x8x256xf32, #tpu.memory_space<vmem>>, vector<1x8x256xf32>
    %2 = vector.shape_cast %1 : vector<1x8x256xf32> to vector<8x256xf32>
    %c17_i32 = arith.constant 17 : i32
    %3 = tpu.dynamic_rotate %2 by %c17_i32 dim 1 : vector<8x256xf32>, i32 -> vector<8x256xf32>
    %4 = vector.extract_strided_slice %0 {offsets = [0, 0], sizes = [1, 256], strides = [1, 1]} : vector<9x256xf32> to vector<1x256xf32>
    %5 = vector.broadcast %4 : vector<1x256xf32> to vector<8x256xf32>
    %6 = arith.mulf %3, %5 : vector<8x256xf32>
    %c0_4 = arith.constant 0 : index
    %c0_5 = arith.constant 0 : index
    %7 = vector.load %arg6[%c0_4, %c0_5] : memref<72x512xf32, #tpu.memory_space<vmem>>, vector<8x256xf32>
    tpu.vector_store %arg6[%c0_4, %c0_5], %6 {strides = array<i32>} : memref<72x512xf32, #tpu.memory_space<vmem>>, vector<8x256xf32>,
    %c16_i32 = arith.constant 16 : i32
    %8 = tpu.dynamic_rotate %2 by %c16_i32 dim 1 : vector<8x256xf32>, i32 -> vector<8x256xf32>
    %9 = vector.extract_strided_slice %0 {offsets = [1, 0], sizes = [1, 256], strides = [1, 1]} : vector<9x256xf32> to vector<1x256xf32>
    %10 = vector.broadcast %9 : vector<1x256xf32> to vector<8x256xf32>
    %11 = arith.mulf %8, %10 : vector<8x256xf32>
    %c8 = arith.constant 8 : index
    %c0_6 = arith.constant 0 : index
    %12 = vector.load %arg6[%c8, %c0_6] : memref<72x512xf32, #tpu.memory_space<vmem>>, vector<8x256xf32>
    tpu.vector_store %arg6[%c8, %c0_6], %11 {strides = array<i32>} : memref<72x512xf32, #tpu.memory_space<vmem>>, vector<8x256xf32>,
    %c15_i32 = arith.constant 15 : i32
    %13 = tpu.dynamic_rotate %2 by %c15_i32 dim 1 : vector<8x256xf32>, i32 -> vector<8x256xf32>
    %14 = vector.extract_strided_slice %0 {offsets = [2, 0], sizes = [1, 256], strides = [1, 1]} : vector<9x256xf32> to vector<1x256xf32>
    %15 = vector.broadcast %14 : vector<1x256xf32> to vector<8x256xf32>
    %16 = arith.mulf %13, %15 : vector<8x256xf32>
    %c16 = arith.constant 16 : index
    %c0_7 = arith.constant 0 : index
    %17 = vector.load %arg6[%c16, %c0_7] : memref<72x512xf32, #tpu.memory_space<vmem>>, vector<8x256xf32>
    tpu.vector_store %arg6[%c16, %c0_7], %16 {strides = array<i32>} : memref<72x512xf32, #tpu.memory_space<vmem>>, vector<8x256xf32>,
    %c1_i32 = arith.constant 1 : i32
    %18 = tpu.dynamic_rotate %2 by %c1_i32 dim 1 : vector<8x256xf32>, i32 -> vector<8x256xf32>
    %19 = vector.extract_strided_slice %0 {offsets = [3, 0], sizes = [1, 256], strides = [1, 1]} : vector<9x256xf32> to vector<1x256xf32>
    %20 = vector.broadcast %19 : vector<1x256xf32> to vector<8x256xf32>
    %21 = arith.mulf %18, %20 : vector<8x256xf32>
    %c24 = arith.constant 24 : index
    %c0_8 = arith.constant 0 : index
    %22 = vector.load %arg6[%c24, %c0_8] : memref<72x512xf32, #tpu.memory_space<vmem>>, vector<8x256xf32>
    tpu.vector_store %arg6[%c24, %c0_8], %21 {strides = array<i32>} : memref<72x512xf32, #tpu.memory_space<vmem>>, vector<8x256xf32>,
    %c32 = arith.constant 32 : index
    %c0_9 = arith.constant 0 : index
    %23 = vector.load %arg6[%c32, %c0_9] : memref<72x512xf32, #tpu.memory_space<vmem>>, vector<8x256xf32>
    tpu.vector_store %arg6[%c32, %c0_9], %2 {strides = array<i32>} : memref<72x512xf32, #tpu.memory_space<vmem>>, vector<8x256xf32>,
    %c255_i32 = arith.constant 255 : i32
    %24 = tpu.dynamic_rotate %2 by %c255_i32 dim 1 : vector<8x256xf32>, i32 -> vector<8x256xf32>
    %25 = vector.extract_strided_slice %0 {offsets = [5, 0], sizes = [1, 256], strides = [1, 1]} : vector<9x256xf32> to vector<1x256xf32>
    %26 = vector.broadcast %25 : vector<1x256xf32> to vector<8x256xf32>
    %27 = arith.mulf %24, %26 : vector<8x256xf32>
    %c40 = arith.constant 40 : index
    %c0_10 = arith.constant 0 : index
    %28 = vector.load %arg6[%c40, %c0_10] : memref<72x512xf32, #tpu.memory_space<vmem>>, vector<8x256xf32>
    tpu.vector_store %arg6[%c40, %c0_10], %27 {strides = array<i32>} : memref<72x512xf32, #tpu.memory_space<vmem>>, vector<8x256xf32>,
    %c241_i32 = arith.constant 241 : i32
    %29 = tpu.dynamic_rotate %2 by %c241_i32 dim 1 : vector<8x256xf32>, i32 -> vector<8x256xf32>
    %30 = vector.extract_strided_slice %0 {offsets = [6, 0], sizes = [1, 256], strides = [1, 1]} : vector<9x256xf32> to vector<1x256xf32>
    %31 = vector.broadcast %30 : vector<1x256xf32> to vector<8x256xf32>
    %32 = arith.mulf %29, %31 : vector<8x256xf32>
    %c48 = arith.constant 48 : index
    %c0_11 = arith.constant 0 : index
    %33 = vector.load %arg6[%c48, %c0_11] : memref<72x512xf32, #tpu.memory_space<vmem>>, vector<8x256xf32>
    tpu.vector_store %arg6[%c48, %c0_11], %32 {strides = array<i32>} : memref<72x512xf32, #tpu.memory_space<vmem>>, vector<8x256xf32>,
    %c240_i32 = arith.constant 240 : i32
    %34 = tpu.dynamic_rotate %2 by %c240_i32 dim 1 : vector<8x256xf32>, i32 -> vector<8x256xf32>
    %35 = vector.extract_strided_slice %0 {offsets = [7, 0], sizes = [1, 256], strides = [1, 1]} : vector<9x256xf32> to vector<1x256xf32>
    %36 = vector.broadcast %35 : vector<1x256xf32> to vector<8x256xf32>
    %37 = arith.mulf %34, %36 : vector<8x256xf32>
    %c56 = arith.constant 56 : index
    %c0_12 = arith.constant 0 : index
    %38 = vector.load %arg6[%c56, %c0_12] : memref<72x512xf32, #tpu.memory_space<vmem>>, vector<8x256xf32>
    tpu.vector_store %arg6[%c56, %c0_12], %37 {strides = array<i32>} : memref<72x512xf32, #tpu.memory_space<vmem>>, vector<8x256xf32>,
    %c239_i32 = arith.constant 239 : i32
    %39 = tpu.dynamic_rotate %2 by %c239_i32 dim 1 : vector<8x256xf32>, i32 -> vector<8x256xf32>
    %40 = vector.extract_strided_slice %0 {offsets = [8, 0], sizes = [1, 256], strides = [1, 1]} : vector<9x256xf32> to vector<1x256xf32>
    %41 = vector.broadcast %40 : vector<1x256xf32> to vector<8x256xf32>
    %42 = arith.mulf %39, %41 : vector<8x256xf32>
    %c64 = arith.constant 64 : index
    %c0_13 = arith.constant 0 : index
    %43 = vector.load %arg6[%c64, %c0_13] : memref<72x512xf32, #tpu.memory_space<vmem>>, vector<8x256xf32>
    tpu.vector_store %arg6[%c64, %c0_13], %42 {strides = array<i32>} : memref<72x512xf32, #tpu.memory_space<vmem>>, vector<8x256xf32>,
    %c1 = arith.constant 1 : index
    %c0_14 = arith.constant 0 : index
    %c0_15 = arith.constant 0 : index
    %44 = vector.load %arg1[%c1, %c0_14, %c0_15] : memref<2x8x256xf32, #tpu.memory_space<vmem>>, vector<1x8x256xf32>
    %45 = vector.shape_cast %44 : vector<1x8x256xf32> to vector<8x256xf32>
    %c17_i32_16 = arith.constant 17 : i32
    %46 = tpu.dynamic_rotate %45 by %c17_i32_16 dim 1 : vector<8x256xf32>, i32 -> vector<8x256xf32>
    %47 = vector.extract_strided_slice %0 {offsets = [0, 0], sizes = [1, 256], strides = [1, 1]} : vector<9x256xf32> to vector<1x256xf32>
    %48 = vector.broadcast %47 : vector<1x256xf32> to vector<8x256xf32>
    %49 = arith.mulf %46, %48 : vector<8x256xf32>
    %c0_17 = arith.constant 0 : index
    %c256 = arith.constant 256 : index
    %50 = vector.load %arg6[%c0_17, %c256] : memref<72x512xf32, #tpu.memory_space<vmem>>, vector<8x256xf32>
    tpu.vector_store %arg6[%c0_17, %c256], %49 {strides = array<i32>} : memref<72x512xf32, #tpu.memory_space<vmem>>, vector<8x256xf32>,
    %c16_i32_18 = arith.constant 16 : i32
    %51 = tpu.dynamic_rotate %45 by %c16_i32_18 dim 1 : vector<8x256xf32>, i32 -> vector<8x256xf32>
    %52 = vector.extract_strided_slice %0 {offsets = [1, 0], sizes = [1, 256], strides = [1, 1]} : vector<9x256xf32> to vector<1x256xf32>
    %53 = vector.broadcast %52 : vector<1x256xf32> to vector<8x256xf32>
    %54 = arith.mulf %51, %53 : vector<8x256xf32>
    %c8_19 = arith.constant 8 : index
    %c256_20 = arith.constant 256 : index
    %55 = vector.load %arg6[%c8_19, %c256_20] : memref<72x512xf32, #tpu.memory_space<vmem>>, vector<8x256xf32>
    tpu.vector_store %arg6[%c8_19, %c256_20], %54 {strides = array<i32>} : memref<72x512xf32, #tpu.memory_space<vmem>>, vector<8x256xf32>,
    %c15_i32_21 = arith.constant 15 : i32
    %56 = tpu.dynamic_rotate %45 by %c15_i32_21 dim 1 : vector<8x256xf32>, i32 -> vector<8x256xf32>
    %57 = vector.extract_strided_slice %0 {offsets = [2, 0], sizes = [1, 256], strides = [1, 1]} : vector<9x256xf32> to vector<1x256xf32>
    %58 = vector.broadcast %57 : vector<1x256xf32> to vector<8x256xf32>
    %59 = arith.mulf %56, %58 : vector<8x256xf32>
    %c16_22 = arith.constant 16 : index
    %c256_23 = arith.constant 256 : index
    %60 = vector.load %arg6[%c16_22, %c256_23] : memref<72x512xf32, #tpu.memory_space<vmem>>, vector<8x256xf32>
    tpu.vector_store %arg6[%c16_22, %c256_23], %59 {strides = array<i32>} : memref<72x512xf32, #tpu.memory_space<vmem>>, vector<8x256xf32>,
    %c1_i32_24 = arith.constant 1 : i32
    %61 = tpu.dynamic_rotate %45 by %c1_i32_24 dim 1 : vector<8x256xf32>, i32 -> vector<8x256xf32>
    %62 = vector.extract_strided_slice %0 {offsets = [3, 0], sizes = [1, 256], strides = [1, 1]} : vector<9x256xf32> to vector<1x256xf32>
    %63 = vector.broadcast %62 : vector<1x256xf32> to vector<8x256xf32>
    %64 = arith.mulf %61, %63 : vector<8x256xf32>
    %c24_25 = arith.constant 24 : index
    %c256_26 = arith.constant 256 : index
    %65 = vector.load %arg6[%c24_25, %c256_26] : memref<72x512xf32, #tpu.memory_space<vmem>>, vector<8x256xf32>
    tpu.vector_store %arg6[%c24_25, %c256_26], %64 {strides = array<i32>} : memref<72x512xf32, #tpu.memory_space<vmem>>, vector<8x256xf32>,
    %c32_27 = arith.constant 32 : index
    %c256_28 = arith.constant 256 : index
    %66 = vector.load %arg6[%c32_27, %c256_28] : memref<72x512xf32, #tpu.memory_space<vmem>>, vector<8x256xf32>
    tpu.vector_store %arg6[%c32_27, %c256_28], %45 {strides = array<i32>} : memref<72x512xf32, #tpu.memory_space<vmem>>, vector<8x256xf32>,
    %c255_i32_29 = arith.constant 255 : i32
    %67 = tpu.dynamic_rotate %45 by %c255_i32_29 dim 1 : vector<8x256xf32>, i32 -> vector<8x256xf32>
    %68 = vector.extract_strided_slice %0 {offsets = [5, 0], sizes = [1, 256], strides = [1, 1]} : vector<9x256xf32> to vector<1x256xf32>
    %69 = vector.broadcast %68 : vector<1x256xf32> to vector<8x256xf32>
    %70 = arith.mulf %67, %69 : vector<8x256xf32>
    %c40_30 = arith.constant 40 : index
    %c256_31 = arith.constant 256 : index
    %71 = vector.load %arg6[%c40_30, %c256_31] : memref<72x512xf32, #tpu.memory_space<vmem>>, vector<8x256xf32>
    tpu.vector_store %arg6[%c40_30, %c256_31], %70 {strides = array<i32>} : memref<72x512xf32, #tpu.memory_space<vmem>>, vector<8x256xf32>,
    %c241_i32_32 = arith.constant 241 : i32
    %72 = tpu.dynamic_rotate %45 by %c241_i32_32 dim 1 : vector<8x256xf32>, i32 -> vector<8x256xf32>
    %73 = vector.extract_strided_slice %0 {offsets = [6, 0], sizes = [1, 256], strides = [1, 1]} : vector<9x256xf32> to vector<1x256xf32>
    %74 = vector.broadcast %73 : vector<1x256xf32> to vector<8x256xf32>
    %75 = arith.mulf %72, %74 : vector<8x256xf32>
    %c48_33 = arith.constant 48 : index
    %c256_34 = arith.constant 256 : index
    %76 = vector.load %arg6[%c48_33, %c256_34] : memref<72x512xf32, #tpu.memory_space<vmem>>, vector<8x256xf32>
    tpu.vector_store %arg6[%c48_33, %c256_34], %75 {strides = array<i32>} : memref<72x512xf32, #tpu.memory_space<vmem>>, vector<8x256xf32>,
    %c240_i32_35 = arith.constant 240 : i32
    %77 = tpu.dynamic_rotate %45 by %c240_i32_35 dim 1 : vector<8x256xf32>, i32 -> vector<8x256xf32>
    %78 = vector.extract_strided_slice %0 {offsets = [7, 0], sizes = [1, 256], strides = [1, 1]} : vector<9x256xf32> to vector<1x256xf32>
    %79 = vector.broadcast %78 : vector<1x256xf32> to vector<8x256xf32>
    %80 = arith.mulf %77, %79 : vector<8x256xf32>
    %c56_36 = arith.constant 56 : index
    %c256_37 = arith.constant 256 : index
    %81 = vector.load %arg6[%c56_36, %c256_37] : memref<72x512xf32, #tpu.memory_space<vmem>>, vector<8x256xf32>
    tpu.vector_store %arg6[%c56_36, %c256_37], %80 {strides = array<i32>} : memref<72x512xf32, #tpu.memory_space<vmem>>, vector<8x256xf32>,
    %c239_i32_38 = arith.constant 239 : i32
    %82 = tpu.dynamic_rotate %45 by %c239_i32_38 dim 1 : vector<8x256xf32>, i32 -> vector<8x256xf32>
    %83 = vector.extract_strided_slice %0 {offsets = [8, 0], sizes = [1, 256], strides = [1, 1]} : vector<9x256xf32> to vector<1x256xf32>
    %84 = vector.broadcast %83 : vector<1x256xf32> to vector<8x256xf32>
    %85 = arith.mulf %82, %84 : vector<8x256xf32>
    %c64_39 = arith.constant 64 : index
    %c256_40 = arith.constant 256 : index
    %86 = vector.load %arg6[%c64_39, %c256_40] : memref<72x512xf32, #tpu.memory_space<vmem>>, vector<8x256xf32>
    tpu.vector_store %arg6[%c64_39, %c256_40], %85 {strides = array<i32>} : memref<72x512xf32, #tpu.memory_space<vmem>>, vector<8x256xf32>,
    %c0_41 = arith.constant 0 : index
    %c0_42 = arith.constant 0 : index
    %87 = vector.load %arg2[%c0_41, %c0_42] : memref<8x72xf32, #tpu.memory_space<vmem>>, vector<8x72xf32>
    %c0_43 = arith.constant 0 : index
    %c0_44 = arith.constant 0 : index
    %88 = vector.load %arg6[%c0_43, %c0_44] : memref<72x512xf32, #tpu.memory_space<vmem>>, vector<72x512xf32>
    %cst = arith.constant dense<0.000000e+00> : vector<8x512xf32>
    %89 = tpu.matmul %87, %88, %cst {dimension_numbers = #tpu.dot_dimension_numbers<[1], [0], [0], [1], [0, 0, 1, 1], [], []>} : vector<8x72xf32>, vector<72x512xf32>, vector<8x512xf32> -> vector<8x512xf32>
    %90 = vector.extract_strided_slice %89 {offsets = [0, 0], sizes = [8, 256], strides = [1, 1]} : vector<8x512xf32> to vector<8x256xf32>
    %cst_45 = arith.constant dense<0.000000e+00> : vector<8xf32>
    %91 = vector.multi_reduction <add>, %90, %cst_45 [1] : vector<8x256xf32> to vector<8xf32>
    %92 = vector.shape_cast %91 : vector<8xf32> to vector<8x1xf32>
    %cst_46 = arith.constant 3.906250e-03 : f32
    %93 = vector.broadcast %cst_46 : f32 to vector<8x1xf32>
    %94 = arith.mulf %92, %93 : vector<8x1xf32>
    %95 = vector.broadcast %94 : vector<8x1xf32> to vector<8x256xf32>
    %96 = arith.subf %90, %95 : vector<8x256xf32>
    %97 = arith.mulf %96, %96 : vector<8x256xf32>
    %cst_47 = arith.constant dense<0.000000e+00> : vector<8xf32>
    %98 = vector.multi_reduction <add>, %97, %cst_47 [1] : vector<8x256xf32> to vector<8xf32>
    %99 = vector.shape_cast %98 : vector<8xf32> to vector<8x1xf32>
    %cst_48 = arith.constant 0.00392156886 : f32
    %100 = vector.broadcast %cst_48 : f32 to vector<8x1xf32>
    %101 = arith.mulf %99, %100 : vector<8x1xf32>
    %102 = math.sqrt %101 : vector<8x1xf32>
    %cst_49 = arith.constant 9.99999974E-6 : f32
    %103 = vector.broadcast %cst_49 : f32 to vector<8x1xf32>
    %104 = arith.maximumf %102, %103 : vector<8x1xf32>
    %cst_50 = arith.constant 1.000000e+00 : f32
    %105 = vector.broadcast %cst_50 : f32 to vector<8x1xf32>
    %106 = arith.divf %105, %104 : vector<8x1xf32>
    %c0_51 = arith.constant 0 : index
    %c0_52 = arith.constant 0 : index
    %c0_53 = arith.constant 0 : index
    %107 = vector.load %arg4[%c0_51, %c0_52, %c0_53] : memref<2x16x1xf32, #tpu.memory_space<vmem>>, vector<1x16x1xf32>
    %108 = vector.shape_cast %107 : vector<1x16x1xf32> to vector<16x1xf32>
    %109 = vector.extract_strided_slice %108 {offsets = [0, 0], sizes = [8, 1], strides = [1, 1]} : vector<16x1xf32> to vector<8x1xf32>
    %110 = arith.mulf %109, %106 : vector<8x1xf32>
    %111 = vector.broadcast %110 : vector<8x1xf32> to vector<8x256xf32>
    %112 = arith.mulf %96, %111 : vector<8x256xf32>
    %113 = vector.extract_strided_slice %108 {offsets = [8, 0], sizes = [8, 1], strides = [1, 1]} : vector<16x1xf32> to vector<8x1xf32>
    %114 = vector.broadcast %113 : vector<8x1xf32> to vector<8x256xf32>
    %115 = arith.addf %112, %114 : vector<8x256xf32>
    %cst_54 = arith.constant 0.000000e+00 : f32
    %116 = vector.broadcast %cst_54 : f32 to vector<8x256xf32>
    %117 = arith.maximumf %115, %116 : vector<8x256xf32>
    %c0_55 = arith.constant 0 : index
    %c0_56 = arith.constant 0 : index
    %c0_57 = arith.constant 0 : index
    %118 = vector.load %arg5[%c0_55, %c0_56, %c0_57] : memref<2x8x256xf32, #tpu.memory_space<vmem>>, vector<1x8x256xf32>
    %119 = vector.shape_cast %118 : vector<1x8x256xf32> to vector<8x256xf32>
    %120 = vector.shape_cast %117 : vector<8x256xf32> to vector<1x8x256xf32>
    tpu.vector_store %arg5[%c0_55, %c0_56, %c0_57], %120 {strides = array<i32>} : memref<2x8x256xf32, #tpu.memory_space<vmem>>, vector<1x8x256xf32>,
    %121 = vector.extract_strided_slice %89 {offsets = [0, 256], sizes = [8, 256], strides = [1, 1]} : vector<8x512xf32> to vector<8x256xf32>
    %cst_58 = arith.constant dense<0.000000e+00> : vector<8xf32>
    %122 = vector.multi_reduction <add>, %121, %cst_58 [1] : vector<8x256xf32> to vector<8xf32>
    %123 = vector.shape_cast %122 : vector<8xf32> to vector<8x1xf32>
    %cst_59 = arith.constant 3.906250e-03 : f32
    %124 = vector.broadcast %cst_59 : f32 to vector<8x1xf32>
    %125 = arith.mulf %123, %124 : vector<8x1xf32>
    %126 = vector.broadcast %125 : vector<8x1xf32> to vector<8x256xf32>
    %127 = arith.subf %121, %126 : vector<8x256xf32>
    %128 = arith.mulf %127, %127 : vector<8x256xf32>
    %cst_60 = arith.constant dense<0.000000e+00> : vector<8xf32>
    %129 = vector.multi_reduction <add>, %128, %cst_60 [1] : vector<8x256xf32> to vector<8xf32>
    %130 = vector.shape_cast %129 : vector<8xf32> to vector<8x1xf32>
    %cst_61 = arith.constant 0.00392156886 : f32
    %131 = vector.broadcast %cst_61 : f32 to vector<8x1xf32>
    %132 = arith.mulf %130, %131 : vector<8x1xf32>
    %133 = math.sqrt %132 : vector<8x1xf32>
    %cst_62 = arith.constant 9.99999974E-6 : f32
    %134 = vector.broadcast %cst_62 : f32 to vector<8x1xf32>
    %135 = arith.maximumf %133, %134 : vector<8x1xf32>
    %cst_63 = arith.constant 1.000000e+00 : f32
    %136 = vector.broadcast %cst_63 : f32 to vector<8x1xf32>
    %137 = arith.divf %136, %135 : vector<8x1xf32>
    %c1_64 = arith.constant 1 : index
    %c0_65 = arith.constant 0 : index
    %c0_66 = arith.constant 0 : index
    %138 = vector.load %arg4[%c1_64, %c0_65, %c0_66] : memref<2x16x1xf32, #tpu.memory_space<vmem>>, vector<1x16x1xf32>
    %139 = vector.shape_cast %138 : vector<1x16x1xf32> to vector<16x1xf32>
    %140 = vector.extract_strided_slice %139 {offsets = [0, 0], sizes = [8, 1], strides = [1, 1]} : vector<16x1xf32> to vector<8x1xf32>
    %141 = arith.mulf %140, %137 : vector<8x1xf32>
    %142 = vector.broadcast %141 : vector<8x1xf32> to vector<8x256xf32>
    %143 = arith.mulf %127, %142 : vector<8x256xf32>
    %144 = vector.extract_strided_slice %139 {offsets = [8, 0], sizes = [8, 1], strides = [1, 1]} : vector<16x1xf32> to vector<8x1xf32>
    %145 = vector.broadcast %144 : vector<8x1xf32> to vector<8x256xf32>
    %146 = arith.addf %143, %145 : vector<8x256xf32>
    %cst_67 = arith.constant 0.000000e+00 : f32
    %147 = vector.broadcast %cst_67 : f32 to vector<8x256xf32>
    %148 = arith.maximumf %146, %147 : vector<8x256xf32>
    %c1_68 = arith.constant 1 : index
    %c0_69 = arith.constant 0 : index
    %c0_70 = arith.constant 0 : index
    %149 = vector.load %arg5[%c1_68, %c0_69, %c0_70] : memref<2x8x256xf32, #tpu.memory_space<vmem>>, vector<1x8x256xf32>
    %150 = vector.shape_cast %149 : vector<1x8x256xf32> to vector<8x256xf32>
    %151 = vector.shape_cast %148 : vector<8x256xf32> to vector<1x8x256xf32>
    tpu.vector_store %arg5[%c1_68, %c0_69, %c0_70], %151 {strides = array<i32>} : memref<2x8x256xf32, #tpu.memory_space<vmem>>, vector<1x8x256xf32>,
    return
  }
  func.func @transform_0(%arg0: i32) -> (i32, i32, i32) {
    %c0_i32 = arith.constant 0 : i32
    %c0_i32_0 = arith.constant 0 : i32
    %c0_i32_1 = arith.constant 0 : i32
    return %arg0, %c0_i32, %c0_i32_0 : i32, i32, i32
  }
  func.func @transform_1(%arg0: i32) -> (i32, i32) {
    %c0_i32 = arith.constant 0 : i32
    %c0_i32_0 = arith.constant 0 : i32
    %c0_i32_1 = arith.constant 0 : i32
    return %c0_i32, %c0_i32_0 : i32, i32
  }
  func.func @transform_2(%arg0: i32) -> (i32, i32) {
    %c0_i32 = arith.constant 0 : i32
    %c0_i32_0 = arith.constant 0 : i32
    %c0_i32_1 = arith.constant 0 : i32
    return %c0_i32, %c0_i32_0 : i32, i32
  }
  func.func @transform_3(%arg0: i32) -> (i32, i32, i32) {
    %c0_i32 = arith.constant 0 : i32
    %c0_i32_0 = arith.constant 0 : i32
    %c0_i32_1 = arith.constant 0 : i32
    return %arg0, %c0_i32, %c0_i32_0 : i32, i32, i32
  }
  func.func @transform_4(%arg0: i32) -> (i32, i32, i32) {
    %c0_i32 = arith.constant 0 : i32
    %c0_i32_0 = arith.constant 0 : i32
    %c0_i32_1 = arith.constant 0 : i32
    return %arg0, %c0_i32, %c0_i32_0 : i32, i32, i32
  }
}

</mosaic_0001>

<llo_original>
// kernel: tpu_custom_call.1
$region0: #{tpu_custom_call.1}
  #allocation0 [shape = 'u32[]', space=smem, size = 0x4, offset = 0x4, fixed_abs, tag = 'smem constant byte address 0x4 - core index']
  #allocation1 [shape = 'u32[144,128]{1,0:T(1,128)}', space=vmem, size = 0x12000, scoped, tag = 'internal scratch']
  #allocation2 [shape = 'f32[72,512]{1,0:T(8,128)}', space=vmem, size = 0x24000, scoped, tag = 'scratch operand']
  %s0 = inlined_call_operand.vmem [shape: f32[4,8,256], index: 0, kind: input, shape index: {}]
  %s1 = inlined_call_operand.hbm [shape: f32[8,72], index: 1, kind: input, shape index: {}]
  %s2 = inlined_call_operand.hbm [shape: f32[9,256], index: 2, kind: input, shape index: {}]
  %s3 = inlined_call_operand.vmem [shape: f32[4,16,1], index: 3, kind: input, shape index: {}]
  %s4 = inlined_call_operand.hbm [shape: f32[4,8,256], index: 4, kind: output, shape index: {}]
  %s5 = sld [smem:[#allocation0]]
  $region57: #{tpu_custom_call.1} parent=0
    _
  %s7 = ssub.s32 1, %s5
  %s8 = scalar_select 0, %s7, %s5
  $region1: #{tpu_custom_call.1} parent=0
    #allocation3 [shape = 'u8[4096]{0}', space=vmem, size = 0x1000, scoped, tag = 'input window, operand 1, single buffered']
    #allocation4 [shape = 's32[2]{0}', space=sflag, size = 0x8, scoped, tag = 'scoped memory for tpu_custom_call.1']
    #allocation5 [shape = 's32[2]{0}', space=sflag, size = 0x8, scoped, tag = 'scoped memory for tpu_custom_call.1']
    #allocation6 [shape = 'u8[16384]{0}', space=vmem, size = 0x4000, scoped, tag = 'input window, operand 2, single buffered']
    #allocation7 [shape = 's32[1]{0}', space=sflag, size = 0x4, scoped, tag = 'scoped memory for tpu_custom_call.1']
    #allocation8 [shape = 'u8[32768]{0}', space=vmem, size = 0x8000, scoped, tag = 'output window, operand 0']
    %9 = vsyncpa [#allocation4], 0
    %10 = vsyncpa [#allocation7], 0
    %11 = vsyncpa [#allocation5], 0
    %s12 = scalar_lea.sflag [#allocation5], 1
    %13 = vsyncpa %s12, 0
    loop: start=0, step=1, limit=4
    $region2: #{tpu_custom_call.1} parent=1 // loop_pre_header
      _
    $region3: #{tpu_custom_call.1} parent=1 // loop_header
      %s15 = sphi 0, %s19
      %p16 = scmp.ge.s32.totalorder %s15, 4
      %s25 = sphi 0, %s27
      %s28 = sphi 0, %s25
      %s29 = sphi 0, %s28
      %s45 = sphi 0, %s29
      %s49 = sphi 0, %s49
      %s51 = sphi 0, %s49
      %s52 = sphi 0, %s51
      %s66 = sphi 0, %s52
      %s70 = sphi 0, %s70
      %s72 = sphi 0, %s70
      %s73 = sphi 0, %s72
      %s87 = sphi 0, %s73
      %s93 = sphi 0, %s95
      %s96 = sphi 0, %s93
      %s97 = sphi 0, %s96
      %s113 = sphi 0, %s97
      %s119 = sphi 0, %s121
      %s122 = sphi 0, %s119
      %s123 = sphi 0, %s122
      %s139 = sphi 0, %s123
    $region4: #{tpu_custom_call.1} parent=1 // loop_header_branch
      %18 = sbr.rel (%p16) target = $region8
    $region5: #{tpu_custom_call.1} parent=1 // loop_body
      %s20 = ssub.s32 %s15, 1
      %s21 = ssub.s32 %s15, 2
      %s22 = sadd.s32 %s15, 1
      %s23 = ssub.s32 %s15, %s22
      %p24 = scmp.eq.s32.totalorder %s23, 0
      %s26 = sadd.s32 %s25, 1
      %s27 = scalar_select %p24, %s25, %s26
      %p30 = pneg %p24
      %p31 = scmp.eq.s32.totalorder %s15, 1
      %p32 = por %p30, %p31
      %p33 = scmp.ne.s32.totalorder %s25, %s28
      %p34 = scmp.eq.s32.totalorder %s15, 0
      %p35 = por %p33, %p34
      %p36 = scmp.ne.s32.totalorder %s25, %s28
      %p37 = scmp.eq.s32.totalorder %s20, 1
      %p38 = por %p36, %p37
      %p39 = scmp.ne.s32.totalorder %s28, %s29
      %p40 = scmp.eq.s32.totalorder %s20, 0
      %p41 = por %p39, %p40
      %p42 = scmp.ne.s32.totalorder %s28, %s29
      %p43 = scmp.eq.s32.totalorder %s21, 1
      %p44 = por %p42, %p43
      %p46 = scmp.ne.s32.totalorder %s29, %s45
      %p47 = scmp.eq.s32.totalorder %s21, 0
      %p48 = por %p46, %p47
      %s50 = sadd.s32 %s49, 1
      %p53 = scmp.eq.s32.totalorder %s15, 1
      %p54 = scmp.ne.s32.totalorder %s49, %s51
      %p55 = scmp.eq.s32.totalorder %s15, 0
      %p56 = por %p54, %p55
      %p57 = scmp.ne.s32.totalorder %s49, %s51
      %p58 = scmp.eq.s32.totalorder %s20, 1
      %p59 = por %p57, %p58
      %p60 = scmp.ne.s32.totalorder %s51, %s52
      %p61 = scmp.eq.s32.totalorder %s20, 0
      %p62 = por %p60, %p61
      %p63 = scmp.ne.s32.totalorder %s51, %s52
      %p64 = scmp.eq.s32.totalorder %s21, 1
      %p65 = por %p63, %p64
      %p67 = scmp.ne.s32.totalorder %s52, %s66
      %p68 = scmp.eq.s32.totalorder %s21, 0
      %p69 = por %p67, %p68
      %s71 = sadd.s32 %s70, 1
      %p74 = scmp.eq.s32.totalorder %s15, 1
      %p75 = scmp.ne.s32.totalorder %s70, %s72
      %p76 = scmp.eq.s32.totalorder %s15, 0
      %p77 = por %p75, %p76
      %p78 = scmp.ne.s32.totalorder %s70, %s72
      %p79 = scmp.eq.s32.totalorder %s20, 1
      %p80 = por %p78, %p79
      %p81 = scmp.ne.s32.totalorder %s72, %s73
      %p82 = scmp.eq.s32.totalorder %s20, 0
      %p83 = por %p81, %p82
      %p84 = scmp.ne.s32.totalorder %s72, %s73
      %p85 = scmp.eq.s32.totalorder %s21, 1
      %p86 = por %p84, %p85
      %p88 = scmp.ne.s32.totalorder %s73, %s87
      %p89 = scmp.eq.s32.totalorder %s21, 0
      %p90 = por %p88, %p89
      %s91 = ssub.s32 %s15, %s22
      %p92 = scmp.eq.s32.totalorder %s91, 0
      %s94 = sadd.s32 %s93, 1
      %s95 = scalar_select %p92, %s93, %s94
      %p98 = pneg %p92
      %p99 = scmp.eq.s32.totalorder %s15, 1
      %p100 = por %p98, %p99
      %p101 = scmp.ne.s32.totalorder %s93, %s96
      %p102 = scmp.eq.s32.totalorder %s15, 0
      %p103 = por %p101, %p102
      %p104 = scmp.ne.s32.totalorder %s93, %s96
      %p105 = scmp.eq.s32.totalorder %s20, 1
      %p106 = por %p104, %p105
      %p107 = scmp.ne.s32.totalorder %s96, %s97
      %p108 = scmp.eq.s32.totalorder %s20, 0
      %p109 = por %p107, %p108
      %p110 = scmp.ne.s32.totalorder %s96, %s97
      %p111 = scmp.eq.s32.totalorder %s21, 1
      %p112 = por %p110, %p111
      %p114 = scmp.ne.s32.totalorder %s97, %s113
      %p115 = scmp.eq.s32.totalorder %s21, 0
      %p116 = por %p114, %p115
      %s117 = ssub.s32 %s15, %s22
      %p118 = scmp.eq.s32.totalorder %s117, 0
      %s120 = sadd.s32 %s119, 1
      %s121 = scalar_select %p118, %s119, %s120
      %p124 = pneg %p118
      %p125 = scmp.eq.s32.totalorder %s15, 1
      %p126 = por %p124, %p125
      %p127 = scmp.ne.s32.totalorder %s119, %s122
      %p128 = scmp.eq.s32.totalorder %s15, 0
      %p129 = por %p127, %p128
      %p130 = scmp.ne.s32.totalorder %s119, %s122
      %p131 = scmp.eq.s32.totalorder %s20, 1
      %p132 = por %p130, %p131
      %p133 = scmp.ne.s32.totalorder %s122, %s123
      %p134 = scmp.eq.s32.totalorder %s20, 0
      %p135 = por %p133, %p134
      %p136 = scmp.ne.s32.totalorder %s122, %s123
      %p137 = scmp.eq.s32.totalorder %s21, 1
      %p138 = por %p136, %p137
      %p140 = scmp.ne.s32.totalorder %s123, %s139
      %p141 = scmp.eq.s32.totalorder %s21, 0
      %p142 = por %p140, %p141
      %p143 = scmp.le.s32.totalorder 1, %s15
      %p144 = scmp.lt.s32.totalorder %s15, 3
      %p145 = pnand %p143, %p144
      %p146 = pneg %p145
      // Predicated region
      $region9: #{tpu_custom_call.1} parent=5 // pred_check
        _
      $region10: #{tpu_custom_call.1} parent=5 // pred_check_branch
        %148 = sbr.rel (%p145) target = $region12
      $region11: #{tpu_custom_call.1} parent=5 // pred_region
        %s149 = ssub.s32 %s15, 1
        // Predicated region
        $region13: #{tpu_custom_call.1} parent=11 // pred_check
          %p150 = pneg %p62
        $region14: #{tpu_custom_call.1} parent=11 // pred_check_branch
          %152 = sbr.rel (%p150) target = $region16
        $region15: #{tpu_custom_call.1} parent=11 // pred_region
          %s154 = ssub.s32 128, 128
          %155 = vsyncadd [#allocation4], %s154
          %s157 = sshll.u32 [#allocation3], 4
          %s158 = int_to_ptr.vmem [resolvable:$true] %s157
          %160 = dma.hbm_to_vmem [thread:$0]  %s1, 128, %s158, [#allocation4]
        $region16: #{tpu_custom_call.1} parent=11 // pred_fallthru
          _
        // Predicated region
        $region17: #{tpu_custom_call.1} parent=11 // pred_check
          %p161 = pneg %p83
        $region18: #{tpu_custom_call.1} parent=11 // pred_check_branch
          %163 = sbr.rel (%p161) target = $region20
        $region19: #{tpu_custom_call.1} parent=11 // pred_region
          %s165 = ssub.s32 512, 512
          %166 = vsyncadd [#allocation7], %s165
          %s167 = sshll.u32 [#allocation6], 4
          %s168 = int_to_ptr.vmem [resolvable:$true] %s167
          %173 = dma.hbm_to_vmem [thread:$0]  %s2, 512, %s168, [#allocation7], 256, 256, 16
        $region20: #{tpu_custom_call.1} parent=11 // pred_fallthru
          _
      $region12: #{tpu_custom_call.1} parent=5 // pred_fallthru
        _
      %p174 = scmp.lt.s32.totalorder %s15, 2
      // Predicated region
      $region21: #{tpu_custom_call.1} parent=5 // pred_check
        %p175 = pneg %p174
      $region22: #{tpu_custom_call.1} parent=5 // pred_check_branch
        %177 = sbr.rel (%p175) target = $region24
      $region23: #{tpu_custom_call.1} parent=5 // pred_region
        // Predicated region
        $region25: #{tpu_custom_call.1} parent=23 // pred_check
          %p178 = pneg %p35
        $region26: #{tpu_custom_call.1} parent=23 // pred_check_branch
          %180 = sbr.rel (%p178) target = $region28
        $region27: #{tpu_custom_call.1} parent=23 // pred_region
          %s181 = smul.u32 2, %s15
          %p182 = scmp.lt.s32.totalorder %s181, 3
          %s183 = scalar_select %p182, %s181, 3
          %s184 = smul.addr %s183, 2
          %s185 = smul.addr %s184, 8
          %s186 = scalar_lea.vmem %s0, %s185
          %s187 = smul.u32 2, %s15
        $region28: #{tpu_custom_call.1} parent=23 // pred_fallthru
          _
        // Predicated region
        $region29: #{tpu_custom_call.1} parent=23 // pred_check
          %p188 = pneg %p103
        $region30: #{tpu_custom_call.1} parent=23 // pred_check_branch
          %190 = sbr.rel (%p188) target = $region32
        $region31: #{tpu_custom_call.1} parent=23 // pred_region
          %s191 = smul.u32 2, %s15
          %p192 = scmp.lt.s32.totalorder %s191, 3
          %s193 = scalar_select %p192, %s191, 3
          %s194 = smul.addr %s193, 2
          %s195 = smul.addr %s194, 8
          %s196 = scalar_lea.vmem %s3, %s195
          %s197 = smul.u32 2, %s15
        $region32: #{tpu_custom_call.1} parent=23 // pred_fallthru
          _
      $region24: #{tpu_custom_call.1} parent=5 // pred_fallthru
        _
      %p198 = scmp.le.s32.totalorder 1, %s15
      %p199 = scmp.lt.s32.totalorder %s15, 3
      %p200 = pnand %p198, %p199
      %p201 = pneg %p200
      // Predicated region
      $region33: #{tpu_custom_call.1} parent=5 // pred_check
        _
      $region34: #{tpu_custom_call.1} parent=5 // pred_check_branch
        %203 = sbr.rel (%p200) target = $region36
      $region35: #{tpu_custom_call.1} parent=5 // pred_region
        %s204 = ssub.s32 %s15, 1
        // Predicated region
        $region37: #{tpu_custom_call.1} parent=35 // pred_check
          %p205 = pneg %p62
        $region38: #{tpu_custom_call.1} parent=35 // pred_check_branch
          %207 = sbr.rel (%p205) target = $region40
        $region39: #{tpu_custom_call.1} parent=35 // pred_region
          %208 = dma.done [#allocation4], 128
        $region40: #{tpu_custom_call.1} parent=35 // pred_fallthru
          _
        // Predicated region
        $region41: #{tpu_custom_call.1} parent=35 // pred_check
          %p209 = pneg %p83
        $region42: #{tpu_custom_call.1} parent=35 // pred_check_branch
          %211 = sbr.rel (%p209) target = $region44
        $region43: #{tpu_custom_call.1} parent=35 // pred_region
          %212 = dma.done [#allocation7], 512
        $region44: #{tpu_custom_call.1} parent=35 // pred_fallthru
          _
        %s213 = smul.u32 2, %s20
        %p214 = scmp.lt.s32.totalorder %s213, 3
        %s215 = scalar_select %p214, %s213, 3
        %s216 = smul.addr %s215, 2
        %s217 = smul.addr %s216, 8
        %s218 = scalar_lea.vmem %s0, %s217
        %p219 = pneg %p41
        %p220 = pneg %p38
        %p221 = pneg %p62
        %p222 = pneg %p59
        %p223 = pneg %p83
        %p224 = pneg %p80
        %s225 = smul.u32 2, %s20
        %p226 = scmp.lt.s32.totalorder %s225, 3
        %s227 = scalar_select %p226, %s225, 3
        %s228 = smul.addr %s227, 2
        %s229 = smul.addr %s228, 8
        %s230 = scalar_lea.vmem %s3, %s229
        %p231 = pneg %p109
        %p232 = pneg %p106
        %p233 = pneg %p135
        %p234 = pneg %p132
        %s235 = sand.u32 %s122, 1
        %s236 = scalar_lea.sflag [#allocation5], %s235
        %s237 = sand.u32 %s122, 1
        %s238 = smul.addr %s237, 32
        %s239 = scalar_lea.vmem [#allocation8], %s238
        %s240 = smul.u32 2, %s20
        %p241 = scmp.lt.s32.totalorder %s240, 3
        %s242 = scalar_select %p241, %s240, 3
        %s243 = smul.addr %s242, 2
        %s244 = smul.addr %s243, 8
        %s245 = scalar_lea.vmem %s0, %s244
        %s246 = smul.u32 2, %s20
        %s247 = smul.u32 2, %s20
        %p248 = scmp.lt.s32.totalorder %s247, 3
        %s249 = scalar_select %p248, %s247, 3
        %s250 = smul.addr %s249, 2
        %s251 = smul.addr %s250, 8
        %s252 = scalar_lea.vmem %s3, %s251
        %s253 = smul.u32 2, %s20
        %s254 = smul.u32 2, %s20
        %v255 = vld [vmem:[#allocation6] sm:$0xff]
        %v256 = vld [vmem:[#allocation6 + $0x8] sm:$0xff]
        %v257 = vld [vmem:[#allocation6 + $0x10] sm:$0x1]
        %v258 = vld [vmem:[#allocation6 + $0x18] sm:$0x1]
        %v259 = vld [vmem:[%s245] sm:$0xff]
        %v260 = vld [vmem:[%s245 + $0x8] sm:$0xff]
        %261 = vrot.lane.b32.xlu0 %v259, 17
        %v262 = vpop.permute.xlu0 %261
        %263 = vrot.lane.b32.xlu0 %v260, 17
        %v264 = vpop.permute.xlu0 %263
        %v265 = vlaneseq
        %v266 = vand.u32 %v265, 127
        %vm267 = vcmp.lt.s32.totalorder %v266, 17
        %v268 = vsel %vm267, %v262, %v264
        %v269 = vsel %vm267, %v264, %v262
        %v270 = vlaneseq
        %v271 = vshrl.u32 %v270, 7
        %v272 = vsub.s32 0, %v271
        %v273 = vrot.slane %v255, %v272
        %v274 = vlaneseq
        %v275 = vshrl.u32 %v274, 7
        %v276 = vsub.s32 0, %v275
        %v277 = vrot.slane %v256, %v276
        %v278 = vmul.f32 %v269, %v273
        %v279 = vmul.f32 %v268, %v277
        %280 = vst [vmem:[#allocation2] sm:$0xff] %v278
        %281 = vst [vmem:[#allocation2 + $0x8] sm:$0xff] %v279
        %282 = vrot.lane.b32.xlu0 %v259, 16
        %v283 = vpop.permute.xlu0 %282
        %284 = vrot.lane.b32.xlu0 %v260, 16
        %v285 = vpop.permute.xlu0 %284
        %vm286 = vcmp.lt.s32.totalorder %v266, 16
        %v287 = vsel %vm286, %v283, %v285
        %v288 = vsel %vm286, %v285, %v283
        %v289 = vlaneseq
        %v290 = vshrl.u32 %v289, 7
        %v291 = vsub.s32 1, %v290
        %v292 = vrot.slane %v255, %v291
        %v293 = vlaneseq
        %v294 = vshrl.u32 %v293, 7
        %v295 = vsub.s32 1, %v294
        %v296 = vrot.slane %v256, %v295
        %v297 = vmul.f32 %v288, %v292
        %v298 = vmul.f32 %v287, %v296
        %299 = vst [vmem:[#allocation2 + $0x20] sm:$0xff] %v297
        %300 = vst [vmem:[#allocation2 + $0x28] sm:$0xff] %v298
        %301 = vrot.lane.b32.xlu0 %v259, 15
        %v302 = vpop.permute.xlu0 %301
        %303 = vrot.lane.b32.xlu0 %v260, 15
        %v304 = vpop.permute.xlu0 %303
        %vm305 = vcmp.lt.s32.totalorder %v266, 15
        %v306 = vsel %vm305, %v302, %v304
        %v307 = vsel %vm305, %v304, %v302
        %v308 = vlaneseq
        %v309 = vshrl.u32 %v308, 7
        %v310 = vsub.s32 2, %v309
        %v311 = vrot.slane %v255, %v310
        %v312 = vlaneseq
        %v313 = vshrl.u32 %v312, 7
        %v314 = vsub.s32 2, %v313
        %v315 = vrot.slane %v256, %v314
        %v316 = vmul.f32 %v307, %v311
        %v317 = vmul.f32 %v306, %v315
        %318 = vst [vmem:[#allocation2 + $0x40] sm:$0xff] %v316
        %319 = vst [vmem:[#allocation2 + $0x48] sm:$0xff] %v317
        %320 = vrot.lane.b32.xlu0 %v259, 1
        %v321 = vpop.permute.xlu0 %320
        %322 = vrot.lane.b32.xlu0 %v260, 1
        %v323 = vpop.permute.xlu0 %322
        %vm324 = vcmp.lt.s32.totalorder %v266, 1
        %v325 = vsel %vm324, %v321, %v323
        %v326 = vsel %vm324, %v323, %v321
        %v327 = vlaneseq
        %v328 = vshrl.u32 %v327, 7
        %v329 = vsub.s32 3, %v328
        %v330 = vrot.slane %v255, %v329
        %v331 = vlaneseq
        %v332 = vshrl.u32 %v331, 7
        %v333 = vsub.s32 3, %v332
        %v334 = vrot.slane %v256, %v333
        %v335 = vmul.f32 %v326, %v330
        %v336 = vmul.f32 %v325, %v334
        %337 = vst [vmem:[#allocation2 + $0x60] sm:$0xff] %v335
        %338 = vst [vmem:[#allocation2 + $0x68] sm:$0xff] %v336
        %339 = vst [vmem:[#allocation2 + $0x80] sm:$0xff] %v259
        %340 = vst [vmem:[#allocation2 + $0x88] sm:$0xff] %v260
        %341 = vrot.lane.b32.xlu0 %v259, 127
        %v342 = vpop.permute.xlu0 %341
        %343 = vrot.lane.b32.xlu0 %v260, 127
        %v344 = vpop.permute.xlu0 %343
        %vm345 = vcmp.lt.s32.totalorder %v266, 127
        %v346 = vsel %vm345, %v342, %v344
        %v347 = vsel %vm345, %v344, %v342
        %v348 = vlaneseq
        %v349 = vshrl.u32 %v348, 7
        %v350 = vsub.s32 5, %v349
        %v351 = vrot.slane %v255, %v350
        %v352 = vlaneseq
        %v353 = vshrl.u32 %v352, 7
        %v354 = vsub.s32 5, %v353
        %v355 = vrot.slane %v256, %v354
        %v356 = vmul.f32 %v346, %v351
        %v357 = vmul.f32 %v347, %v355
        %358 = vst [vmem:[#allocation2 + $0xa0] sm:$0xff] %v356
        %359 = vst [vmem:[#allocation2 + $0xa8] sm:$0xff] %v357
        %360 = vrot.lane.b32.xlu0 %v259, 113
        %v361 = vpop.permute.xlu0 %360
        %362 = vrot.lane.b32.xlu0 %v260, 113
        %v363 = vpop.permute.xlu0 %362
        %vm364 = vcmp.lt.s32.totalorder %v266, 113
        %v365 = vsel %vm364, %v361, %v363
        %v366 = vsel %vm364, %v363, %v361
        %v367 = vlaneseq
        %v368 = vshrl.u32 %v367, 7
        %v369 = vsub.s32 6, %v368
        %v370 = vrot.slane %v255, %v369
        %v371 = vlaneseq
        %v372 = vshrl.u32 %v371, 7
        %v373 = vsub.s32 6, %v372
        %v374 = vrot.slane %v256, %v373
        %v375 = vmul.f32 %v365, %v370
        %v376 = vmul.f32 %v366, %v374
        %377 = vst [vmem:[#allocation2 + $0xc0] sm:$0xff] %v375
        %378 = vst [vmem:[#allocation2 + $0xc8] sm:$0xff] %v376
        %379 = vrot.lane.b32.xlu0 %v259, 112
        %v380 = vpop.permute.xlu0 %379
        %381 = vrot.lane.b32.xlu0 %v260, 112
        %v382 = vpop.permute.xlu0 %381
        %vm383 = vcmp.lt.s32.totalorder %v266, 112
        %v384 = vsel %vm383, %v380, %v382
        %v385 = vsel %vm383, %v382, %v380
        %v386 = vlaneseq
        %v387 = vshrl.u32 %v386, 7
        %v388 = vsub.s32 7, %v387
        %v389 = vrot.slane %v255, %v388
        %v390 = vlaneseq
        %v391 = vshrl.u32 %v390, 7
        %v392 = vsub.s32 7, %v391
        %v393 = vrot.slane %v256, %v392
        %v394 = vmul.f32 %v384, %v389
        %v395 = vmul.f32 %v385, %v393
        %396 = vst [vmem:[#allocation2 + $0xe0] sm:$0xff] %v394
        %397 = vst [vmem:[#allocation2 + $0xe8] sm:$0xff] %v395
        %398 = vrot.lane.b32.xlu0 %v259, 111
        %v399 = vpop.permute.xlu0 %398
        %400 = vrot.lane.b32.xlu0 %v260, 111
        %v401 = vpop.permute.xlu0 %400
        %vm402 = vcmp.lt.s32.totalorder %v266, 111
        %v403 = vsel %vm402, %v399, %v401
        %v404 = vsel %vm402, %v401, %v399
        %v405 = vlaneseq
        %v406 = vshrl.u32 %v405, 7
        %v407 = vsub.s32 0, %v406
        %v408 = vrot.slane %v257, %v407
        %v409 = vlaneseq
        %v410 = vshrl.u32 %v409, 7
        %v411 = vsub.s32 0, %v410
        %v412 = vrot.slane %v258, %v411
        %v413 = vmul.f32 %v403, %v408
        %v414 = vmul.f32 %v404, %v412
        %415 = vst [vmem:[#allocation2 + $0x100] sm:$0xff] %v413
        %416 = vst [vmem:[#allocation2 + $0x108] sm:$0xff] %v414
        %s417 = scalar_lea.vmem %s245, 16
        %v418 = vld [vmem:[%s417] sm:$0xff]
        %v419 = vld [vmem:[%s417 + $0x8] sm:$0xff]
        %420 = vrot.lane.b32.xlu0 %v418, 17
        %v421 = vpop.permute.xlu0 %420
        %422 = vrot.lane.b32.xlu0 %v419, 17
        %v423 = vpop.permute.xlu0 %422
        %v424 = vsel %vm267, %v421, %v423
        %v425 = vsel %vm267, %v423, %v421
        %v426 = vmul.f32 %v425, %v273
        %v427 = vmul.f32 %v424, %v277
        %428 = vst [vmem:[#allocation2 + $0x10] sm:$0xff] %v426
        %429 = vst [vmem:[#allocation2 + $0x18] sm:$0xff] %v427
        %430 = vrot.lane.b32.xlu0 %v418, 16
        %v431 = vpop.permute.xlu0 %430
        %432 = vrot.lane.b32.xlu0 %v419, 16
        %v433 = vpop.permute.xlu0 %432
        %v434 = vsel %vm286, %v431, %v433
        %v435 = vsel %vm286, %v433, %v431
        %v436 = vmul.f32 %v435, %v292
        %v437 = vmul.f32 %v434, %v296
        %438 = vst [vmem:[#allocation2 + $0x30] sm:$0xff] %v436
        %439 = vst [vmem:[#allocation2 + $0x38] sm:$0xff] %v437
        %440 = vrot.lane.b32.xlu0 %v418, 15
        %v441 = vpop.permute.xlu0 %440
        %442 = vrot.lane.b32.xlu0 %v419, 15
        %v443 = vpop.permute.xlu0 %442
        %v444 = vsel %vm305, %v441, %v443
        %v445 = vsel %vm305, %v443, %v441
        %v446 = vmul.f32 %v445, %v311
        %v447 = vmul.f32 %v444, %v315
        %448 = vst [vmem:[#allocation2 + $0x50] sm:$0xff] %v446
        %449 = vst [vmem:[#allocation2 + $0x58] sm:$0xff] %v447
        %450 = vrot.lane.b32.xlu0 %v418, 1
        %v451 = vpop.permute.xlu0 %450
        %452 = vrot.lane.b32.xlu0 %v419, 1
        %v453 = vpop.permute.xlu0 %452
        %v454 = vsel %vm324, %v451, %v453
        %v455 = vsel %vm324, %v453, %v451
        %v456 = vmul.f32 %v455, %v330
        %v457 = vmul.f32 %v454, %v334
        %458 = vst [vmem:[#allocation2 + $0x70] sm:$0xff] %v456
        %459 = vst [vmem:[#allocation2 + $0x78] sm:$0xff] %v457
        %460 = vst [vmem:[#allocation2 + $0x90] sm:$0xff] %v418
        %461 = vst [vmem:[#allocation2 + $0x98] sm:$0xff] %v419
        %462 = vrot.lane.b32.xlu0 %v418, 127
        %v463 = vpop.permute.xlu0 %462
        %464 = vrot.lane.b32.xlu0 %v419, 127
        %v465 = vpop.permute.xlu0 %464
        %v466 = vsel %vm345, %v463, %v465
        %v467 = vsel %vm345, %v465, %v463
        %v468 = vmul.f32 %v466, %v351
        %v469 = vmul.f32 %v467, %v355
        %470 = vst [vmem:[#allocation2 + $0xb0] sm:$0xff] %v468
        %471 = vst [vmem:[#allocation2 + $0xb8] sm:$0xff] %v469
        %472 = vrot.lane.b32.xlu0 %v418, 113
        %v473 = vpop.permute.xlu0 %472
        %474 = vrot.lane.b32.xlu0 %v419, 113
        %v475 = vpop.permute.xlu0 %474
        %v476 = vsel %vm364, %v473, %v475
        %v477 = vsel %vm364, %v475, %v473
        %v478 = vmul.f32 %v476, %v370
        %v479 = vmul.f32 %v477, %v374
        %480 = vst [vmem:[#allocation2 + $0xd0] sm:$0xff] %v478
        %481 = vst [vmem:[#allocation2 + $0xd8] sm:$0xff] %v479
        %482 = vrot.lane.b32.xlu0 %v418, 112
        %v483 = vpop.permute.xlu0 %482
        %484 = vrot.lane.b32.xlu0 %v419, 112
        %v485 = vpop.permute.xlu0 %484
        %v486 = vsel %vm383, %v483, %v485
        %v487 = vsel %vm383, %v485, %v483
        %v488 = vmul.f32 %v486, %v389
        %v489 = vmul.f32 %v487, %v393
        %490 = vst [vmem:[#allocation2 + $0xf0] sm:$0xff] %v488
        %491 = vst [vmem:[#allocation2 + $0xf8] sm:$0xff] %v489
        %492 = vrot.lane.b32.xlu0 %v418, 111
        %v493 = vpop.permute.xlu0 %492
        %494 = vrot.lane.b32.xlu0 %v419, 111
        %v495 = vpop.permute.xlu0 %494
        %v496 = vsel %vm402, %v493, %v495
        %v497 = vsel %vm402, %v495, %v493
        %v498 = vmul.f32 %v496, %v408
        %v499 = vmul.f32 %v497, %v412
        %500 = vst [vmem:[#allocation2 + $0x110] sm:$0xff] %v498
        %501 = vst [vmem:[#allocation2 + $0x118] sm:$0xff] %v499
        %v502 = vld [vmem:[#allocation3] sm:$0xff]
        %v503 = vld [vmem:[#allocation2] sm:$0xff]
        %v504 = vld [vmem:[#allocation2 + $0x8] sm:$0xff]
        %v505 = vld [vmem:[#allocation2 + $0x10] sm:$0xff]
        %v506 = vld [vmem:[#allocation2 + $0x18] sm:$0xff]
        %v507 = vld [vmem:[#allocation2 + $0x20] sm:$0xff]
        %v508 = vld [vmem:[#allocation2 + $0x28] sm:$0xff]
        %v509 = vld [vmem:[#allocation2 + $0x30] sm:$0xff]
        %v510 = vld [vmem:[#allocation2 + $0x38] sm:$0xff]
        %v511 = vld [vmem:[#allocation2 + $0x40] sm:$0xff]
        %v512 = vld [vmem:[#allocation2 + $0x48] sm:$0xff]
        %v513 = vld [vmem:[#allocation2 + $0x50] sm:$0xff]
        %v514 = vld [vmem:[#allocation2 + $0x58] sm:$0xff]
        %v515 = vld [vmem:[#allocation2 + $0x60] sm:$0xff]
        %v516 = vld [vmem:[#allocation2 + $0x68] sm:$0xff]
        %v517 = vld [vmem:[#allocation2 + $0x70] sm:$0xff]
        %v518 = vld [vmem:[#allocation2 + $0x78] sm:$0xff]
        %v519 = vld [vmem:[#allocation2 + $0x80] sm:$0xff]
        %v520 = vld [vmem:[#allocation2 + $0x88] sm:$0xff]
        %v521 = vld [vmem:[#allocation2 + $0x90] sm:$0xff]
        %v522 = vld [vmem:[#allocation2 + $0x98] sm:$0xff]
        %v523 = vld [vmem:[#allocation2 + $0xa0] sm:$0xff]
        %v524 = vld [vmem:[#allocation2 + $0xa8] sm:$0xff]
        %v525 = vld [vmem:[#allocation2 + $0xb0] sm:$0xff]
        %v526 = vld [vmem:[#allocation2 + $0xb8] sm:$0xff]
        %v527 = vld [vmem:[#allocation2 + $0xc0] sm:$0xff]
        %v528 = vld [vmem:[#allocation2 + $0xc8] sm:$0xff]
        %v529 = vld [vmem:[#allocation2 + $0xd0] sm:$0xff]
        %v530 = vld [vmem:[#allocation2 + $0xd8] sm:$0xff]
        %v531 = vld [vmem:[#allocation2 + $0xe0] sm:$0xff]
        %v532 = vld [vmem:[#allocation2 + $0xe8] sm:$0xff]
        %v533 = vld [vmem:[#allocation2 + $0xf0] sm:$0xff]
        %v534 = vld [vmem:[#allocation2 + $0xf8] sm:$0xff]
        %v535 = vld [vmem:[#allocation2 + $0x100] sm:$0xff]
        %v536 = vld [vmem:[#allocation2 + $0x108] sm:$0xff]
        %v537 = vld [vmem:[#allocation2 + $0x110] sm:$0xff]
        %v538 = vld [vmem:[#allocation2 + $0x118] sm:$0xff]
        %vm539 = vcmask 588800
        %v541 = vsel %vm539, %v502, 0
        %543 = vmatprep.subr.mxu0 %v504
        %544 = vmatpush1.msra.mxu0 %v503
        %545 = vmatprep.subr.mxu0 %v508
        %546 = vmatpush1.msra.mxu0 %v507
        %547 = vmatprep.subr.mxu0 %v512
        %548 = vmatpush1.msra.mxu0 %v511
        %549 = vmatprep.subr.mxu0 %v516
        %550 = vmatpush1.msra.mxu0 %v515
        %551 = vmatprep.subr.mxu0 %v520
        %552 = vmatpush1.msra.mxu0 %v519
        %553 = vmatprep.subr.mxu0 %v524
        %554 = vmatpush1.msra.mxu0 %v523
        %555 = vmatprep.subr.mxu0 %v528
        %556 = vmatpush1.msra.mxu0 %v527
        %557 = vmatprep.subr.mxu0 %v532
        %558 = vmatpush1.msra.mxu0 %v531
        %559 = vmatprep.subr.mxu0 %v536
        %560 = vmatpush1.msra.mxu0 %v535
        %561 = vmatprep.subr.mxu0 0.0
        %562 = vmatpush1.msra.mxu0 0.0
        %563 = vmatprep.subr.mxu0 0.0
        %564 = vmatpush1.msra.mxu0 0.0
        %565 = vmatprep.subr.mxu0 0.0
        %566 = vmatpush1.msra.mxu0 0.0
        %567 = vmatprep.subr.mxu0 0.0
        %568 = vmatpush1.msra.mxu0 0.0
        %569 = vmatprep.subr.mxu0 0.0
        %570 = vmatpush1.msra.mxu0 0.0
        %571 = vmatprep.subr.mxu0 0.0
        %572 = vmatpush1.msra.mxu0 0.0
        %573 = vmatprep.subr.mxu0 0.0
        %574 = vmatpush1.msra.mxu0 0.0
        %575 = vmatprep.subr.mxu0 0.0
        %576 = vmatpush1.msra.mxu0 0.0
        %577 = vmatprep.subr.mxu0 0.0
        %578 = vmatpush1.msra.mxu0 0.0
        %579 = vmatprep.subr.mxu0 0.0
        %580 = vmatpush1.msra.mxu0 0.0
        %581 = vmatprep.subr.mxu0 0.0
        %582 = vmatpush1.msra.mxu0 0.0
        %583 = vmatprep.subr.mxu0 0.0
        %584 = vmatpush1.msra.mxu0 0.0
        %585 = vmatprep.subr.mxu0 0.0
        %586 = vmatpush1.msra.mxu0 0.0
        %587 = vmatprep.subr.mxu0 0.0
        %588 = vmatpush1.msra.mxu0 0.0
        %589 = vmatprep.subr.mxu0 0.0
        %590 = vmatpush1.msra.mxu0 0.0
        %591 = vmatprep.subr.mxu0 0.0
        %592 = vmatpush1.msra.mxu0 0.0
        %593 = vmatprep.subr.mxu0 0.0
        %594 = vmatpush1.msra.mxu0 0.0
        %595 = vmatprep.subr.mxu0 0.0
        %596 = vmatpush1.msra.mxu0 0.0
        %597 = vmatprep.subr.mxu0 0.0
        %598 = vmatpush1.msra.mxu0 0.0
        %599 = vmatprep.subr.mxu0 0.0
        %600 = vmatpush1.msra.mxu0 0.0
        %601 = vmatprep.subr.mxu0 0.0
        %602 = vmatpush1.msra.mxu0 0.0
        %603 = vmatprep.subr.mxu0 0.0
        %604 = vmatpush1.msra.mxu0 0.0
        %605 = vmatprep.subr.mxu0 0.0
        %606 = vmatpush1.msra.mxu0 0.0
        %607 = vmatprep.mubr.f32.mxu0 0.0
        %608 = vmatmul.mubr.f32.gmra.mrb[0].mxu0 %v541
        %v609 = vpop.f32.mrb[0].mxu0
        %v610 = vadd.f32 0.0, %v609
        %v611 = vpop.f32.mrb[0].mxu0
        %v612 = vadd.f32 0.0, %v611
        %613 = vdwg.mxu0
        %614 = vmatprep.subr.mxu0 %v506
        %615 = vmatpush1.msra.mxu0 %v505
        %616 = vmatprep.subr.mxu0 %v510
        %617 = vmatpush1.msra.mxu0 %v509
        %618 = vmatprep.subr.mxu0 %v514
        %619 = vmatpush1.msra.mxu0 %v513
        %620 = vmatprep.subr.mxu0 %v518
        %621 = vmatpush1.msra.mxu0 %v517
        %622 = vmatprep.subr.mxu0 %v522
        %623 = vmatpush1.msra.mxu0 %v521
        %624 = vmatprep.subr.mxu0 %v526
        %625 = vmatpush1.msra.mxu0 %v525
        %626 = vmatprep.subr.mxu0 %v530
        %627 = vmatpush1.msra.mxu0 %v529
        %628 = vmatprep.subr.mxu0 %v534
        %629 = vmatpush1.msra.mxu0 %v533
        %630 = vmatprep.subr.mxu0 %v538
        %631 = vmatpush1.msra.mxu0 %v537
        %632 = vmatprep.subr.mxu0 0.0
        %633 = vmatpush1.msra.mxu0 0.0
        %634 = vmatprep.subr.mxu0 0.0
        %635 = vmatpush1.msra.mxu0 0.0
        %636 = vmatprep.subr.mxu0 0.0
        %637 = vmatpush1.msra.mxu0 0.0
        %638 = vmatprep.subr.mxu0 0.0
        %639 = vmatpush1.msra.mxu0 0.0
        %640 = vmatprep.subr.mxu0 0.0
        %641 = vmatpush1.msra.mxu0 0.0
        %642 = vmatprep.subr.mxu0 0.0
        %643 = vmatpush1.msra.mxu0 0.0
        %644 = vmatprep.subr.mxu0 0.0
        %645 = vmatpush1.msra.mxu0 0.0
        %646 = vmatprep.subr.mxu0 0.0
        %647 = vmatpush1.msra.mxu0 0.0
        %648 = vmatprep.subr.mxu0 0.0
        %649 = vmatpush1.msra.mxu0 0.0
        %650 = vmatprep.subr.mxu0 0.0
        %651 = vmatpush1.msra.mxu0 0.0
        %652 = vmatprep.subr.mxu0 0.0
        %653 = vmatpush1.msra.mxu0 0.0
        %654 = vmatprep.subr.mxu0 0.0
        %655 = vmatpush1.msra.mxu0 0.0
        %656 = vmatprep.subr.mxu0 0.0
        %657 = vmatpush1.msra.mxu0 0.0
        %658 = vmatprep.subr.mxu0 0.0
        %659 = vmatpush1.msra.mxu0 0.0
        %660 = vmatprep.subr.mxu0 0.0
        %661 = vmatpush1.msra.mxu0 0.0
        %662 = vmatprep.subr.mxu0 0.0
        %663 = vmatpush1.msra.mxu0 0.0
        %664 = vmatprep.subr.mxu0 0.0
        %665 = vmatpush1.msra.mxu0 0.0
        %666 = vmatprep.subr.mxu0 0.0
        %667 = vmatpush1.msra.mxu0 0.0
        %668 = vmatprep.subr.mxu0 0.0
        %669 = vmatpush1.msra.mxu0 0.0
        %670 = vmatprep.subr.mxu0 0.0
        %671 = vmatpush1.msra.mxu0 0.0
        %672 = vmatprep.subr.mxu0 0.0
        %673 = vmatpush1.msra.mxu0 0.0
        %674 = vmatprep.subr.mxu0 0.0
        %675 = vmatpush1.msra.mxu0 0.0
        %676 = vmatprep.subr.mxu0 0.0
        %677 = vmatpush1.msra.mxu0 0.0
        %678 = vmatprep.mubr.f32.mxu0 0.0
        %679 = vmatmul.mubr.f32.gmra.mrb[0].mxu0 %v541
        %v680 = vpop.f32.mrb[0].mxu0
        %v681 = vadd.f32 0.0, %v680
        %v682 = vpop.f32.mrb[0].mxu0
        %v683 = vadd.f32 0.0, %v682
        %684 = vdwg.mxu0
        %v685 = vadd.f32 %v610, %v612
        %686 = vadd.xlane.f32.xlu0 %v685
        %v687 = vpop.xlane.xlu0 %686
        %v688 = vmul.f32 %v687, 0.00390625
        %v689 = vsub.f32 %v610, %v688
        %v690 = vsub.f32 %v612, %v688
        %v691 = vmul.f32 %v689, %v689
        %v692 = vmul.f32 %v690, %v690
        %v693 = vadd.f32 %v691, %v692
        %694 = vadd.xlane.f32.xlu0 %v693
        %v695 = vpop.xlane.xlu0 %694
        %v696 = vmul.f32 %v695, 0.003921569
        %v697 = vrsqrt.pop %v696
        %v698 = vmul.f32 %v696, %v697
        %vm699 = vcmp.eq.f32.partialorder %v696, inf
        %v700 = vsel %vm699, %v696, %v698
        %vm701 = vcmp.eq.f32.partialorder %v696, 0.0
        %v702 = vand.u32 %v696, 2147483648
        %v703 = vsel %vm701, %v702, %v700
        %v704 = vmax.f32 %v703, 1e-05
        %v705 = vrcp.pop %v704
        %v706 = vmul.f32 1.0, %v705
        %v707 = vld [vmem:[%s252] sm:$0xff]
        %v708 = vld [vmem:[%s252 + $0x8] sm:$0xff]
        %v709 = vmul.f32 %v707, %v706
        %711 = vset.pattern.permute.xlu0 0
        %712 = vperm.xlu0 %711, %v709
        %v713 = vpop.permute.xlu0 %712
        %v715 = vmul.f32 %v689, %v713
        %v716 = vmul.f32 %v690, %v713
        %718 = vset.pattern.permute.xlu0 0
        %719 = vperm.xlu0 %718, %v708
        %v720 = vpop.permute.xlu0 %719
        %v722 = vadd.f32 %v715, %v720
        %v723 = vadd.f32 %v716, %v720
        %v724 = vmax.f32 %v722, 0.0
        %v725 = vmax.f32 %v723, 0.0
        %726 = vst [vmem:[%s239] sm:$0xff] %v724
        %727 = vst [vmem:[%s239 + $0x8] sm:$0xff] %v725
        %v728 = vadd.f32 %v681, %v683
        %729 = vadd.xlane.f32.xlu0 %v728
        %v730 = vpop.xlane.xlu0 %729
        %v731 = vmul.f32 %v730, 0.00390625
        %v732 = vsub.f32 %v681, %v731
        %v733 = vsub.f32 %v683, %v731
        %v734 = vmul.f32 %v732, %v732
        %v735 = vmul.f32 %v733, %v733
        %v736 = vadd.f32 %v734, %v735
        %737 = vadd.xlane.f32.xlu0 %v736
        %v738 = vpop.xlane.xlu0 %737
        %v739 = vmul.f32 %v738, 0.003921569
        %v740 = vrsqrt.pop %v739
        %v741 = vmul.f32 %v739, %v740
        %vm742 = vcmp.eq.f32.partialorder %v739, inf
        %v743 = vsel %vm742, %v739, %v741
        %vm744 = vcmp.eq.f32.partialorder %v739, 0.0
        %v745 = vand.u32 %v739, 2147483648
        %v746 = vsel %vm744, %v745, %v743
        %v747 = vmax.f32 %v746, 1e-05
        %v748 = vrcp.pop %v747
        %v749 = vmul.f32 1.0, %v748
        %s750 = scalar_lea.vmem %s252, 16
        %v751 = vld [vmem:[%s750] sm:$0xff]
        %v752 = vld [vmem:[%s750 + $0x8] sm:$0xff]
        %v753 = vmul.f32 %v751, %v749
        %755 = vset.pattern.permute.xlu0 0
        %756 = vperm.xlu0 %755, %v753
        %v757 = vpop.permute.xlu0 %756
        %v759 = vmul.f32 %v732, %v757
        %v760 = vmul.f32 %v733, %v757
        %762 = vset.pattern.permute.xlu0 0
        %763 = vperm.xlu0 %762, %v752
        %v764 = vpop.permute.xlu0 %763
        %v766 = vadd.f32 %v759, %v764
        %v767 = vadd.f32 %v760, %v764
        %v768 = vmax.f32 %v766, 0.0
        %v769 = vmax.f32 %v767, 0.0
        %s770 = scalar_lea.vmem %s239, 16 [#allocation8]
        %771 = vst [vmem:[%s770] sm:$0xff] %v768
        %772 = vst [vmem:[%s770 + $0x8] sm:$0xff] %v769
        %s773 = sand.u32 %s122, 1
        %s774 = scalar_lea.sflag [#allocation5], %s773
        %s775 = sand.u32 %s122, 1
        %s776 = smul.addr %s775, 32
        %s777 = scalar_lea.vmem [#allocation8], %s776
        // Predicated region
        $region45: #{tpu_custom_call.1} parent=35 // pred_check
          %p778 = pneg %p132
        $region46: #{tpu_custom_call.1} parent=35 // pred_check_branch
          %780 = sbr.rel (%p778) target = $region48
        $region47: #{tpu_custom_call.1} parent=35 // pred_region
          %s781 = smul.u32 2, %s20
          %s783 = ssub.s32 512, 512
          %784 = vsyncadd %s774, %s783
          %s785 = smul.addr %s781, 2
          %s786 = smul.addr %s785, 128
          %s787 = scalar_lea.hbm %s4, %s786
          %s788 = sshll.u32 %s777, 4
          %s789 = int_to_ptr.vmem [resolvable:$true] %s788
          %794 = dma.vmem_to_hbm [thread:$0]  %s789, 512, %s787, %s774, 256, 256, 16
        $region48: #{tpu_custom_call.1} parent=35 // pred_fallthru
          _
      $region36: #{tpu_custom_call.1} parent=5 // pred_fallthru
        _
      %p795 = scmp.le.s32.totalorder 2, %s15
      // Predicated region
      $region49: #{tpu_custom_call.1} parent=5 // pred_check
        %p796 = pneg %p795
      $region50: #{tpu_custom_call.1} parent=5 // pred_check_branch
        %798 = sbr.rel (%p796) target = $region52
      $region51: #{tpu_custom_call.1} parent=5 // pred_region
        %s799 = ssub.s32 %s15, 2
        // Predicated region
        $region53: #{tpu_custom_call.1} parent=51 // pred_check
          %p800 = pneg %p138
        $region54: #{tpu_custom_call.1} parent=51 // pred_check_branch
          %802 = sbr.rel (%p800) target = $region56
        $region55: #{tpu_custom_call.1} parent=51 // pred_region
          %s803 = sand.u32 %s123, 1
          %s804 = scalar_lea.sflag [#allocation5], %s803
          %s805 = sand.u32 %s123, 1
          %s806 = smul.addr %s805, 32
          %s807 = scalar_lea.vmem [#allocation8], %s806
          %808 = dma.done %s804, 512
        $region56: #{tpu_custom_call.1} parent=51 // pred_fallthru
          _
      $region52: #{tpu_custom_call.1} parent=5 // pred_fallthru
        _
    $region6: #{tpu_custom_call.1} parent=1 // loop_footer
      %s19 = sadd.s32 1, %s15
    $region7: #{tpu_custom_call.1} parent=1 // loop_footer_branch
      %14 = sbr.rel target = $region3
    $region8: #{tpu_custom_call.1} parent=1 // loop_exit
      _
    %809 = vsyncpa [#allocation4], 1
    %s810 = scalar_lea.sflag [#allocation4], 1
    %811 = vsyncpa %s810, 1
    %812 = vsyncpa [#allocation7], 1
    %813 = vsyncpa [#allocation5], 1
    %s814 = scalar_lea.sflag [#allocation5], 1
    %815 = vsyncpa %s814, 1

</llo_original>
